<compile_context>
chip_gen: v7x
topology: tpu7x:2x2x1
jax: 0.10.0
libtpu: 0.0.40
codegen_flags: <defaults>
</compile_context>

<pallas_src>
import jax
import jax.numpy as jnp
from jax.experimental import pallas as pl
from jax.experimental.pallas import tpu as pltpu


def _round_up(x, m):
    return ((x + m - 1) // m) * m


# --------------------------------------------------------------------------
# Kernel: one (tm, tv) output tile, K-tiled matmul with f32 accumulator.
# --------------------------------------------------------------------------
def _make_kernel(apply_log):
    def kernel(x_ref, w_ref, b_ref, o_ref, acc_ref):
        k = pl.program_id(2)

        @pl.when(k == 0)
        def _():
            acc_ref[...] = jnp.zeros_like(acc_ref)

        acc_ref[...] += jnp.dot(x_ref[...], w_ref[...],
                                preferred_element_type=jnp.float32)

        @pl.when(k == pl.num_programs(2) - 1)
        def _():
            acc = acc_ref[...] + b_ref[...]          # f32 bias, broadcast rows
            if apply_log:
                # Matches the module's avg.log_() with norm_fn=None; unsafe
                # for non-positive mean logits (original semantics kept).
                acc = jnp.log(acc)
            o_ref[...] = acc.astype(o_ref.dtype)

    return kernel


# --------------------------------------------------------------------------
# Generation-aware VMEM budget and tile selection.
# --------------------------------------------------------------------------
def _vmem_budget():
    """Returns (usable VMEM budget bytes, max M-tile) for this TPU generation."""
    cap = None
    try:
        cap = int(pltpu.get_tpu_info().vmem_capacity_bytes)
    except Exception:
        cap = None
    if not cap:
        kind = ""
        try:
            kind = jax.devices()[0].device_kind.lower()
        except Exception:
            pass
        cap = (64 << 20) if "v7" in kind else (128 << 20)
    # Keep ~16 MiB headroom for compiler scratch / spill; don't grab the whole
    # part even on 128 MiB chips.
    budget = max(min(cap - (16 << 20), 100 << 20), 32 << 20)
    # Past the HBM roofline knee: ~1024 rows on v5e/v6e, ~512 per TC on v7x.
    max_tm = 512 if cap <= (64 << 20) else 1024
    return budget, max_tm


def _choose_tiles(M, V_pad, K_pad, in_bytes, out_bytes, budget, max_tm):
    # tv: lane-dense and divides the (once-padded) vocab, so cached weights
    # never need re-padding per call.
    tv = 512
    while tv > 128 and (tv > V_pad or V_pad % tv):
        tv -= 128
    tv = max(tv, 128)

    # tm: multiple of 16 (bf16 sublane packing); clamp to the padded M so the
    # weight is streamed exactly once for small (decode) M.
    M16 = _round_up(M, 16)
    tm = _round_up(min(max_tm, M16), 16)

    def vmem_use(tm_, tv_, tk_):
        return (2 * (tm_ * tk_ + tk_ * tv_) * in_bytes   # double-buffered x, W
                + 2 * tv_ * 4                            # bias (f32)
                + 2 * tm_ * tv_ * out_bytes              # double-buffered out
                + tm_ * tv_ * 4)                         # f32 accumulator

    # Shrink tm until a minimal-K tile fits the budget (safety net).
    while tm > 16 and vmem_use(tm, tv, 256) > budget:
        tm = max(16, ((tm // 2) + 15) // 16 * 16)

    # tk: largest multiple of 256 that divides K_pad and fits the budget.
    tk = 256
    for cand in (K_pad, 8192, 4096, 2048, 1024, 512, 256):
        if cand <= K_pad and K_pad % cand == 0 and vmem_use(tm, tv, cand) <= budget:
            tk = cand
            break

    # Megacore: avoid a 1x1 (M, V) parallel grid on 2-TC parts.
    if (M + tm - 1) // tm == 1 and V_pad // tv == 1 and V_pad >= 256:
        for cand in (256, 128):
            if cand < tv and V_pad % cand == 0 and V_pad // cand >= 2:
                tv = cand
                break

    return tm, tv, tk


# --------------------------------------------------------------------------
# One-time parameter prep: fuse N projections into a single (W, b).
#   sum_i x_i @ W_i == concat(x_i, -1) @ concat_rows(W_i)
# The uniform 1/N is folded into W and b here, so the kernel is one matmul.
# --------------------------------------------------------------------------
def _prepare_params(weights, biases, compute_dtype):
    n = len(weights)
    inv_n = 1.0 / float(n)
    V = int(weights[0].shape[1])
    w = jnp.concatenate([jnp.asarray(wi) for wi in weights], axis=0)   # [K, V]
    b = sum(jnp.asarray(bi).astype(jnp.float32) for bi in biases)      # [V]
    K = int(w.shape[0])
    K_pad = _round_up(K, 256)   # 256-wide MXU contraction (v6e/v7x)
    V_pad = _round_up(V, 128)   # lane-dense stores
    w = (w.astype(jnp.float32) * inv_n).astype(compute_dtype)
    b = (b * inv_n).reshape(1, V)
    if (K_pad, V_pad) != (K, V):
        w = jnp.pad(w, ((0, K_pad - K), (0, V_pad - V)))
    if V_pad != V:
        b = jnp.pad(b, ((0, 0), (0, V_pad - V)))
    # Materialize now so this cost is paid exactly once, not per forward.
    w = jax.block_until_ready(w)
    b = jax.block_until_ready(b)
    return w, b, K, K_pad, V, V_pad


class UniformStrategyPallas:
    """JAX/Pallas equivalent of UniformStrategy (norm_fn=None path)."""

    # TODO(synk): norm_fn (softmax/log_softmax probability averaging) not
    # implemented; only the default norm_fn=None mean-of-logits path.

    def __init__(self, weights, biases, *, to_log=False,
                 compute_dtype=jnp.bfloat16, out_dtype=jnp.float32):
        assert len(weights) == len(biases) and len(weights) >= 1
        self.to_log = to_log
        self.compute_dtype = compute_dtype
        self.out_dtype = out_dtype
        self.vocab_size = int(weights[0].shape[1])
        self._weights = [jnp.asarray(w) for w in weights]
        self._biases = [jnp.asarray(b) for b in biases]
        # One-time fused prep for the averaging path.
        self._fused = _prepare_params(self._weights, self._biases, compute_dtype)
        # Per-decoder params for select_single, built lazily and cached.
        self._single_cache = {}

    def _single_params(self, idx):
        p = self._single_cache.get(idx)
        if p is None:
            p = _prepare_params([self._weights[idx]], [self._biases[idx]],
                                self.compute_dtype)
            self._single_cache[idx] = p
        return p

    def __call__(self, unprojected_outs, select_single=None, _tiles=None):
        """unprojected_outs: list of [B, S, D_i]. Returns (logits [B,S,V], None)."""
        if select_single is not None:
            xs = [unprojected_outs[select_single]]
            w, b, K, K_pad, V, V_pad = self._single_params(select_single)
            apply_log = False          # original returns the projection directly
        else:
            xs = list(unprojected_outs)
            w, b, K, K_pad, V, V_pad = self._fused
            apply_log = self.to_log

        B, S = xs[0].shape[:2]
        M = B * S

        # Per-call activation prep only (weights were prepped once above).
        x = jnp.concatenate([xi.reshape(M, xi.shape[-1]) for xi in xs], axis=1)
        x = x.astype(self.compute_dtype)
        if K_pad != K:
            x = jnp.pad(x, ((0, 0), (0, K_pad - K)))

        in_bytes = jnp.dtype(self.compute_dtype).itemsize
        out_bytes = jnp.dtype(self.out_dtype).itemsize
        budget, max_tm = _vmem_budget()
        if _tiles is not None:                       # test/tuning override
            tm, tv, tk = _tiles
            assert tm % 8 == 0 and tv % 128 == 0 and tk % 128 == 0
            assert V_pad % tv == 0 and K_pad % tk == 0
        else:
            tm, tv, tk = _choose_tiles(M, V_pad, K_pad, in_bytes, out_bytes,
                                       budget, max_tm)

        M_pad = _round_up(M, tm)
        if M_pad != M:
            x = jnp.pad(x, ((0, M_pad - M), (0, 0)))

        grid = (M_pad // tm, V_pad // tv, K_pad // tk)

        out = pl.pallas_call(
            _make_kernel(apply_log),
            out_shape=jax.ShapeDtypeStruct((M_pad, V_pad), self.out_dtype),
            grid=grid,
            in_specs=[
                pl.BlockSpec((tm, tk), lambda i, j, k: (i, k)),   # activations
                pl.BlockSpec((tk, tv), lambda i, j, k: (k, j)),   # fused weights
                pl.BlockSpec((1, tv), lambda i, j, k: (0, j)),    # fused bias
            ],
            out_specs=pl.BlockSpec((tm, tv), lambda i, j, k: (i, j)),
            scratch_shapes=[pltpu.VMEM((tm, tv), jnp.float32)],
            compiler_params=pltpu.CompilerParams(
                dimension_semantics=("parallel", "parallel", "arbitrary"),
                vmem_limit_bytes=int(budget)),
        )(x, w, b)

        if M_pad != M or V_pad != V:
            out = out[:M, :V]
        return out.reshape(B, S, V), None


# --------------------------------------------------------------------------
# Reference + self-test.
# --------------------------------------------------------------------------
def _reference(unprojected_outs, weights, biases, to_log=False):
    logits = [jnp.einsum("bsd,dv->bsv", x, w) + b[None, None, :]
              for x, w, b in zip(unprojected_outs, weights, biases)]
    avg = sum(logits) / float(len(logits))
    if to_log:
        avg = jnp.log(avg)
    return avg


if __name__ == "__main__":
    key = jax.random.PRNGKey(0)

    # --- Case 1: small decode-like shapes -----------------------------------
    B, S = 2, 8
    out_embed_dims = [32, 48]
    vocab_size = 256

    keys = jax.random.split(key, 2 * len(out_embed_dims))
    weights, biases, xs = [], [], []
    for i, d in enumerate(out_embed_dims):
        # OutputProjection init: W ~ U(-0.1, 0.1) [V, D] in PyTorch -> [D, V]
        # here; b = zeros([V]).
        w = jax.random.uniform(keys[2 * i], (d, vocab_size),
                               minval=-0.1, maxval=0.1, dtype=jnp.float32)
        weights.append(w)
        biases.append(jnp.zeros((vocab_size,), jnp.float32))
        xs.append(jax.random.normal(keys[2 * i + 1], (B, S, d),
                                    dtype=jnp.float32))

    strat = UniformStrategyPallas(weights, biases)

    avg, ptt = strat(xs)
    avg = jax.block_until_ready(avg)
    assert ptt is None and avg.shape == (B, S, vocab_size)
    ref = _reference(xs, weights, biases)
    assert jnp.allclose(avg, ref, atol=2e-2, rtol=2e-2), (
        float(jnp.max(jnp.abs(avg - ref))))

    # select_single path (that projection's logits only, no averaging/log).
    single, _ = strat(xs, select_single=1)
    single = jax.block_until_ready(single)
    ref_single = _reference([xs[1]], [weights[1]], [biases[1]])
    assert jnp.allclose(single, ref_single, atol=2e-2, rtol=2e-2)

    # to_log path (positive biases keep the mean logits > 0, like the module
    # assumes when taking log of averaged scores).
    biases_pos = [jnp.full((vocab_size,), 4.0, jnp.float32)
                  for _ in out_embed_dims]
    strat_log = UniformStrategyPallas(weights, biases_pos, to_log=True)
    avg_log, _ = strat_log(xs)
    avg_log = jax.block_until_ready(avg_log)
    ref_log = _reference(xs, weights, biases_pos, to_log=True)
    assert jnp.allclose(avg_log, ref_log, atol=2e-2, rtol=2e-2)

    # --- Case 2: bigger K/V, forced small tiles to exercise the K-tiled
    # accumulator (multi-tile grid on all three axes). ------------------------
    dims2, vocab2 = [96, 224], 384
    keys2 = jax.random.split(jax.random.PRNGKey(1), 2 * len(dims2))
    w2, b2, x2 = [], [], []
    for i, d in enumerate(dims2):
        w2.append(jax.random.uniform(keys2[2 * i], (d, vocab2),
                                     minval=-0.1, maxval=0.1,
                                     dtype=jnp.float32))
        b2.append(jax.random.normal(keys2[2 * i + 1], (vocab2,),
                                    dtype=jnp.float32) * 0.1)
        x2.append(jax.random.normal(jax.random.fold_in(key, i), (B, S, d),
                                    dtype=jnp.float32))
    strat2 = UniformStrategyPallas(w2, b2)
    avg2, _ = strat2(x2, _tiles=(16, 128, 256))   # grid (1, 3, 2)
    avg2 = jax.block_until_ready(avg2)
    ref2 = _reference(x2, w2, b2)
    assert jnp.allclose(avg2, ref2, atol=2e-2, rtol=2e-2), (
        float(jnp.max(jnp.abs(avg2 - ref2))))

    print("KERNEL_OK")
</pallas_src>

<mosaic_0001>
module attributes {stable_mosaic.version = 11 : i64} {
  func.func @kernel(%arg0: i32, %arg1: i32, %arg2: i32, %arg3: memref<16x256xbf16, #tpu.memory_space<vmem>>, %arg4: memref<256x128xbf16, #tpu.memory_space<vmem>>, %arg5: memref<1x128xf32, #tpu.memory_space<vmem>>, %arg6: memref<16x128xf32, #tpu.memory_space<vmem>>, %arg7: memref<16x128xf32, #tpu.memory_space<vmem>>) attributes {dimension_semantics = [#tpu.dimension_semantics<parallel>, #tpu.dimension_semantics<parallel>, #tpu.dimension_semantics<arbitrary>], iteration_bounds = array<i64: 1, 2, 1>, scalar_prefetch = 0 : i64, scratch_operands = 1 : i64, tpu.core_type = #tpu.core_type<tc>, window_params = [{transform_indices = @transform_0, window_bounds = array<i64: 16, 256>}, {transform_indices = @transform_1, window_bounds = array<i64: 256, 128>}, {transform_indices = @transform_2, window_bounds = array<i64: 1, 128>}, {transform_indices = @transform_3, window_bounds = array<i64: 16, 128>}]} {
    %c0_i32 = arith.constant 0 : i32
    %0 = arith.cmpi eq, %arg2, %c0_i32 : i32
    %1 = arith.extui %0 : i1 to i32
    %c0_i32_0 = arith.constant 0 : i32
    %2 = arith.cmpi ne, %1, %c0_i32_0 : i32
    scf.if %2 {
      %cst_10 = arith.constant 0.000000e+00 : f32
      %12 = vector.broadcast %cst_10 : f32 to vector<16x128xf32>
      %c0_11 = arith.constant 0 : index
      %c0_12 = arith.constant 0 : index
      %13 = vector.load %arg7[%c0_11, %c0_12] : memref<16x128xf32, #tpu.memory_space<vmem>>, vector<16x128xf32>
      tpu.vector_store %arg7[%c0_11, %c0_12], %12 {strides = array<i32>} : memref<16x128xf32, #tpu.memory_space<vmem>>, vector<16x128xf32>,
    } else {
    }
    %c0 = arith.constant 0 : index
    %c0_1 = arith.constant 0 : index
    %3 = vector.load %arg7[%c0, %c0_1] : memref<16x128xf32, #tpu.memory_space<vmem>>, vector<16x128xf32>
    %c0_2 = arith.constant 0 : index
    %c0_3 = arith.constant 0 : index
    %4 = vector.load %arg3[%c0_2, %c0_3] : memref<16x256xbf16, #tpu.memory_space<vmem>>, vector<16x256xbf16>
    %c0_4 = arith.constant 0 : index
    %c0_5 = arith.constant 0 : index
    %5 = vector.load %arg4[%c0_4, %c0_5] : memref<256x128xbf16, #tpu.memory_space<vmem>>, vector<256x128xbf16>
    %cst = arith.constant dense<0.000000e+00> : vector<16x128xf32>
    %6 = tpu.matmul %4, %5, %cst {dimension_numbers = #tpu.dot_dimension_numbers<[1], [0], [0], [1], [0, 0, 1, 1], [], []>} : vector<16x256xbf16>, vector<256x128xbf16>, vector<16x128xf32> -> vector<16x128xf32>
    %7 = arith.addf %3, %6 : vector<16x128xf32>
    %c0_6 = arith.constant 0 : index
    %c0_7 = arith.constant 0 : index
    %8 = vector.load %arg7[%c0_6, %c0_7] : memref<16x128xf32, #tpu.memory_space<vmem>>, vector<16x128xf32>
    tpu.vector_store %arg7[%c0_6, %c0_7], %7 {strides = array<i32>} : memref<16x128xf32, #tpu.memory_space<vmem>>, vector<16x128xf32>,
    %c0_i32_8 = arith.constant 0 : i32
    %9 = arith.cmpi eq, %arg2, %c0_i32_8 : i32
    %10 = arith.extui %9 : i1 to i32
    %c0_i32_9 = arith.constant 0 : i32
    %11 = arith.cmpi ne, %10, %c0_i32_9 : i32
    scf.if %11 {
      %c0_10 = arith.constant 0 : index
      %c0_11 = arith.constant 0 : index
      %12 = vector.load %arg7[%c0_10, %c0_11] : memref<16x128xf32, #tpu.memory_space<vmem>>, vector<16x128xf32>
      %c0_12 = arith.constant 0 : index
      %c0_13 = arith.constant 0 : index
      %13 = vector.load %arg5[%c0_12, %c0_13] : memref<1x128xf32, #tpu.memory_space<vmem>>, vector<1x128xf32>
      %14 = vector.broadcast %13 : vector<1x128xf32> to vector<16x128xf32>
      %15 = arith.addf %12, %14 : vector<16x128xf32>
      %c0_14 = arith.constant 0 : index
      %c0_15 = arith.constant 0 : index
      %16 = vector.load %arg6[%c0_14, %c0_15] : memref<16x128xf32, #tpu.memory_space<vmem>>, vector<16x128xf32>
      tpu.vector_store %arg6[%c0_14, %c0_15], %15 {strides = array<i32>} : memref<16x128xf32, #tpu.memory_space<vmem>>, vector<16x128xf32>,
    } else {
    }
    return
  }
  func.func @transform_0(%arg0: i32, %arg1: i32, %arg2: i32) -> (i32, i32) {
    %c0_i32 = arith.constant 0 : i32
    return %arg0, %arg2 : i32, i32
  }
  func.func @transform_1(%arg0: i32, %arg1: i32, %arg2: i32) -> (i32, i32) {
    %c0_i32 = arith.constant 0 : i32
    return %arg2, %arg1 : i32, i32
  }
  func.func @transform_2(%arg0: i32, %arg1: i32, %arg2: i32) -> (i32, i32) {
    %c0_i32 = arith.constant 0 : i32
    %c0_i32_0 = arith.constant 0 : i32
    return %c0_i32, %arg1 : i32, i32
  }
  func.func @transform_3(%arg0: i32, %arg1: i32, %arg2: i32) -> (i32, i32) {
    %c0_i32 = arith.constant 0 : i32
    return %arg0, %arg1 : i32, i32
  }
}

</mosaic_0001>

<llo_original>
// kernel: tpu_custom_call.1
$region0: #{tpu_custom_call.1}
  #allocation0 [shape = 'u32[]', space=smem, size = 0x4, offset = 0x4, fixed_abs, tag = 'smem constant byte address 0x4 - core index']
  #allocation1 [shape = 'u32[144,128]{1,0:T(1,128)}', space=vmem, size = 0x12000, scoped, tag = 'internal scratch']
  #allocation2 [shape = 'f32[16,128]{1,0:T(8,128)}', space=vmem, size = 0x2000, scoped, tag = 'scratch operand']
  %s0 = inlined_call_operand.hbm [shape: bf16[16,256], index: 0, kind: input, shape index: {}]
  %s1 = inlined_call_operand.hbm [shape: bf16[256,256], index: 1, kind: input, shape index: {}]
  %s2 = inlined_call_operand.hbm [shape: f32[1,256], index: 2, kind: input, shape index: {}]
  %s3 = inlined_call_operand.hbm [shape: f32[16,256], index: 3, kind: output, shape index: {}]
  %s4 = sld [smem:[#allocation0]]
  $region65: #{tpu_custom_call.1} parent=0
    _
  %s6 = ssub.s32 1, %s4
  %s7 = scalar_select 0, %s6, %s4
  $region1: #{tpu_custom_call.1} parent=0
    #allocation3 [shape = 'u8[8192]{0}', space=vmem, size = 0x2000, scoped, tag = 'input window, operand 0, single buffered']
    #allocation4 [shape = 's32[2]{0}', space=sflag, size = 0x8, scoped, tag = 'scoped memory for tpu_custom_call.1']
    #allocation5 [shape = 's32[2]{0}', space=sflag, size = 0x8, scoped, tag = 'scoped memory for tpu_custom_call.1']
    #allocation6 [shape = 'u8[131072]{0}', space=vmem, size = 0x20000, scoped, tag = 'input window, operand 1']
    #allocation7 [shape = 's32[2]{0}', space=sflag, size = 0x8, scoped, tag = 'scoped memory for tpu_custom_call.1']
    #allocation8 [shape = 'u8[1024]{0}', space=vmem, size = 0x400, scoped, tag = 'input window, operand 2']
    #allocation9 [shape = 'u8[16384]{0}', space=vmem, size = 0x4000, scoped, tag = 'output window, operand 0']
    %8 = vsyncpa [#allocation4], 0
    %9 = vsyncpa [#allocation7], 0
    %s10 = scalar_lea.sflag [#allocation7], 1
    %11 = vsyncpa %s10, 0
    %12 = vsyncpa [#allocation5], 0
    %s13 = scalar_lea.sflag [#allocation5], 1
    %14 = vsyncpa %s13, 0
    loop: start=0, step=1, limit=4
    $region2: #{tpu_custom_call.1} parent=1 // loop_pre_header
      _
    $region3: #{tpu_custom_call.1} parent=1 // loop_header
      %s16 = sphi 0, %s20
      %p17 = scmp.ge.s32.totalorder %s16, 4
      %s23 = sphi 0, %s42
      %s24 = sphi 0, %s38
      %s25 = sphi 0, %s34
      %s26 = sphi 0, %s23
      %s27 = sphi 0, %s24
      %s28 = sphi 0, %s25
      %s29 = sphi 0, %s26
      %s30 = sphi 0, %s27
      %s31 = sphi 0, %s28
      %s47 = sphi 0, %s49
      %s50 = sphi 0, %s47
      %s51 = sphi 0, %s50
      %s67 = sphi 0, %s51
      %s75 = sphi 0, %s77
      %s78 = sphi 0, %s75
      %s79 = sphi 0, %s78
      %s95 = sphi 0, %s79
      %s101 = sphi 0, %s103
      %s104 = sphi 0, %s101
      %s105 = sphi 0, %s104
      %s121 = sphi 0, %s105
      %s129 = sphi 0, %s131
      %s132 = sphi 0, %s129
      %s133 = sphi 0, %s132
      %s149 = sphi 0, %s133
    $region4: #{tpu_custom_call.1} parent=1 // loop_header_branch
      %19 = sbr.rel (%p17) target = $region8
    $region5: #{tpu_custom_call.1} parent=1 // loop_body
      %s21 = ssub.s32 %s16, 1
      %s22 = ssub.s32 %s16, 2
      %s32 = sadd.s32 1, %s25
      %p33 = scmp.ge.s32.totalorder %s32, 1
      %s34 = scalar_select %p33, 0, %s32
      %s35 = sadd.s32 1, %s24
      %s36 = scalar_select %p33, %s35, %s24
      %p37 = scmp.ge.s32.totalorder %s36, 2
      %s38 = scalar_select %p37, 0, %s36
      %s39 = sadd.s32 1, %s23
      %s40 = scalar_select %p37, %s39, %s23
      %p41 = scmp.ge.s32.totalorder %s40, 1
      %s42 = scalar_select %p41, 0, %s40
      %s43 = ssub.s32 %s23, %s42
      %s44 = ssub.s32 %s25, %s34
      %s45 = sor.u32 %s43, %s44
      %p46 = scmp.eq.s32.totalorder %s45, 0
      %s48 = sadd.s32 %s47, 1
      %s49 = scalar_select %p46, %s47, %s48
      %p52 = pneg %p46
      %p53 = scmp.eq.s32.totalorder %s16, 1
      %p54 = por %p52, %p53
      %p55 = scmp.ne.s32.totalorder %s47, %s50
      %p56 = scmp.eq.s32.totalorder %s16, 0
      %p57 = por %p55, %p56
      %p58 = scmp.ne.s32.totalorder %s47, %s50
      %p59 = scmp.eq.s32.totalorder %s21, 1
      %p60 = por %p58, %p59
      %p61 = scmp.ne.s32.totalorder %s50, %s51
      %p62 = scmp.eq.s32.totalorder %s21, 0
      %p63 = por %p61, %p62
      %p64 = scmp.ne.s32.totalorder %s50, %s51
      %p65 = scmp.eq.s32.totalorder %s22, 1
      %p66 = por %p64, %p65
      %p68 = scmp.ne.s32.totalorder %s51, %s67
      %p69 = scmp.eq.s32.totalorder %s22, 0
      %p70 = por %p68, %p69
      %s71 = ssub.s32 %s25, %s34
      %s72 = ssub.s32 %s24, %s38
      %s73 = sor.u32 %s71, %s72
      %p74 = scmp.eq.s32.totalorder %s73, 0
      %s76 = sadd.s32 %s75, 1
      %s77 = scalar_select %p74, %s75, %s76
      %p80 = pneg %p74
      %p81 = scmp.eq.s32.totalorder %s16, 1
      %p82 = por %p80, %p81
      %p83 = scmp.ne.s32.totalorder %s75, %s78
      %p84 = scmp.eq.s32.totalorder %s16, 0
      %p85 = por %p83, %p84
      %p86 = scmp.ne.s32.totalorder %s75, %s78
      %p87 = scmp.eq.s32.totalorder %s21, 1
      %p88 = por %p86, %p87
      %p89 = scmp.ne.s32.totalorder %s78, %s79
      %p90 = scmp.eq.s32.totalorder %s21, 0
      %p91 = por %p89, %p90
      %p92 = scmp.ne.s32.totalorder %s78, %s79
      %p93 = scmp.eq.s32.totalorder %s22, 1
      %p94 = por %p92, %p93
      %p96 = scmp.ne.s32.totalorder %s79, %s95
      %p97 = scmp.eq.s32.totalorder %s22, 0
      %p98 = por %p96, %p97
      %s99 = ssub.s32 %s24, %s38
      %p100 = scmp.eq.s32.totalorder %s99, 0
      %s102 = sadd.s32 %s101, 1
      %s103 = scalar_select %p100, %s101, %s102
      %p106 = pneg %p100
      %p107 = scmp.eq.s32.totalorder %s16, 1
      %p108 = por %p106, %p107
      %p109 = scmp.ne.s32.totalorder %s101, %s104
      %p110 = scmp.eq.s32.totalorder %s16, 0
      %p111 = por %p109, %p110
      %p112 = scmp.ne.s32.totalorder %s101, %s104
      %p113 = scmp.eq.s32.totalorder %s21, 1
      %p114 = por %p112, %p113
      %p115 = scmp.ne.s32.totalorder %s104, %s105
      %p116 = scmp.eq.s32.totalorder %s21, 0
      %p117 = por %p115, %p116
      %p118 = scmp.ne.s32.totalorder %s104, %s105
      %p119 = scmp.eq.s32.totalorder %s22, 1
      %p120 = por %p118, %p119
      %p122 = scmp.ne.s32.totalorder %s105, %s121
      %p123 = scmp.eq.s32.totalorder %s22, 0
      %p124 = por %p122, %p123
      %s125 = ssub.s32 %s23, %s42
      %s126 = ssub.s32 %s24, %s38
      %s127 = sor.u32 %s125, %s126
      %p128 = scmp.eq.s32.totalorder %s127, 0
      %s130 = sadd.s32 %s129, 1
      %s131 = scalar_select %p128, %s129, %s130
      %p134 = pneg %p128
      %p135 = scmp.eq.s32.totalorder %s16, 1
      %p136 = por %p134, %p135
      %p137 = scmp.ne.s32.totalorder %s129, %s132
      %p138 = scmp.eq.s32.totalorder %s16, 0
      %p139 = por %p137, %p138
      %p140 = scmp.ne.s32.totalorder %s129, %s132
      %p141 = scmp.eq.s32.totalorder %s21, 1
      %p142 = por %p140, %p141
      %p143 = scmp.ne.s32.totalorder %s132, %s133
      %p144 = scmp.eq.s32.totalorder %s21, 0
      %p145 = por %p143, %p144
      %p146 = scmp.ne.s32.totalorder %s132, %s133
      %p147 = scmp.eq.s32.totalorder %s22, 1
      %p148 = por %p146, %p147
      %p150 = scmp.ne.s32.totalorder %s133, %s149
      %p151 = scmp.eq.s32.totalorder %s22, 0
      %p152 = por %p150, %p151
      %p153 = scmp.le.s32.totalorder 1, %s16
      %p154 = scmp.lt.s32.totalorder %s16, 3
      %p155 = pnand %p153, %p154
      %p156 = pneg %p155
      // Predicated region
      $region9: #{tpu_custom_call.1} parent=5 // pred_check
        _
      $region10: #{tpu_custom_call.1} parent=5 // pred_check_branch
        %158 = sbr.rel (%p155) target = $region12
      $region11: #{tpu_custom_call.1} parent=5 // pred_region
        %s159 = ssub.s32 %s16, 1
        // Predicated region
        $region13: #{tpu_custom_call.1} parent=11 // pred_check
          %p160 = pneg %p63
        $region14: #{tpu_custom_call.1} parent=11 // pred_check_branch
          %162 = sbr.rel (%p160) target = $region16
        $region15: #{tpu_custom_call.1} parent=11 // pred_region
          %s163 = smul.u32 2, %s26
          %s164 = smul.u32 2, %s28
          %s166 = ssub.s32 256, 256
          %167 = vsyncadd [#allocation4], %s166
          %s168 = smul.addr %s163, 2
          %s169 = sadd.s32 %s164, %s168
          %s170 = smul.addr %s169, 64
          %s171 = scalar_lea.hbm %s0, %s170
          %s172 = sshll.u32 [#allocation3], 4
          %s173 = int_to_ptr.vmem [resolvable:$true] %s172
          %178 = dma.hbm_to_vmem [thread:$0]  %s171, 256, %s173, [#allocation4], 128, 128, 8
        $region16: #{tpu_custom_call.1} parent=11 // pred_fallthru
          _
      $region12: #{tpu_custom_call.1} parent=5 // pred_fallthru
        _
      %p179 = scmp.lt.s32.totalorder %s16, 2
      // Predicated region
      $region17: #{tpu_custom_call.1} parent=5 // pred_check
        %p180 = pneg %p179
      $region18: #{tpu_custom_call.1} parent=5 // pred_check_branch
        %182 = sbr.rel (%p180) target = $region20
      $region19: #{tpu_custom_call.1} parent=5 // pred_region
        // Predicated region
        $region21: #{tpu_custom_call.1} parent=19 // pred_check
          %p183 = pneg %p85
        $region22: #{tpu_custom_call.1} parent=19 // pred_check_branch
          %185 = sbr.rel (%p183) target = $region24
        $region23: #{tpu_custom_call.1} parent=19 // pred_region
          %s186 = sand.u32 %s16, 1
          %s187 = scalar_lea.sflag [#allocation7], %s186
          %s188 = sand.u32 %s75, 1
          %s189 = smul.addr %s188, 128
          %s190 = scalar_lea.vmem [#allocation6], %s189
          %s191 = smul.u32 32, %s25
          %s193 = ssub.s32 2048, 2048
          %194 = vsyncadd %s187, %s193
          %s195 = smul.addr %s191, 2
          %s196 = sadd.s32 %s24, %s195
          %s197 = smul.addr %s196, 64
          %s198 = scalar_lea.hbm %s1, %s197
          %s199 = sshll.u32 %s190, 4
          %s200 = int_to_ptr.vmem [resolvable:$true] %s199
          %205 = dma.hbm_to_vmem [thread:$0]  %s198, 2048, %s200, %s187, 128, 64, 4
        $region24: #{tpu_custom_call.1} parent=19 // pred_fallthru
          _
        // Predicated region
        $region25: #{tpu_custom_call.1} parent=19 // pred_check
          %p206 = pneg %p111
        $region26: #{tpu_custom_call.1} parent=19 // pred_check_branch
          %208 = sbr.rel (%p206) target = $region28
        $region27: #{tpu_custom_call.1} parent=19 // pred_region
          %s209 = sand.u32 %s16, 1
          %s210 = scalar_lea.sflag [#allocation7], %s209
          %s211 = sand.u32 %s101, 1
          %s212 = scalar_lea.vmem [#allocation8], %s211
          %s214 = ssub.s32 16, 16
          %215 = vsyncadd %s210, %s214
          %s216 = smul.addr %s24, 16
          %s217 = scalar_lea.hbm %s2, %s216
          %s219 = sshll.u32 %s212, 4
          %s220 = int_to_ptr.vmem [resolvable:$true] %s219
          %222 = dma.hbm_to_vmem [thread:$0]  %s217, 16, %s220, %s210
        $region28: #{tpu_custom_call.1} parent=19 // pred_fallthru
          _
      $region20: #{tpu_custom_call.1} parent=5 // pred_fallthru
        _
      %p223 = scmp.le.s32.totalorder 1, %s16
      %p224 = scmp.lt.s32.totalorder %s16, 3
      %p225 = pnand %p223, %p224
      %p226 = pneg %p225
      // Predicated region
      $region29: #{tpu_custom_call.1} parent=5 // pred_check
        _
      $region30: #{tpu_custom_call.1} parent=5 // pred_check_branch
        %228 = sbr.rel (%p225) target = $region32
      $region31: #{tpu_custom_call.1} parent=5 // pred_region
        %s229 = ssub.s32 %s16, 1
        // Predicated region
        $region33: #{tpu_custom_call.1} parent=31 // pred_check
          %p230 = pneg %p63
        $region34: #{tpu_custom_call.1} parent=31 // pred_check_branch
          %232 = sbr.rel (%p230) target = $region36
        $region35: #{tpu_custom_call.1} parent=31 // pred_region
          %233 = dma.done [#allocation4], 256
        $region36: #{tpu_custom_call.1} parent=31 // pred_fallthru
          _
        %s234 = sand.u32 %s21, 1
        %s235 = scalar_lea.sflag [#allocation7], %s234
        %s236 = sand.u32 %s78, 1
        %s237 = smul.addr %s236, 128
        %s238 = scalar_lea.vmem [#allocation6], %s237
        // Predicated region
        $region37: #{tpu_custom_call.1} parent=31 // pred_check
          %p239 = pneg %p91
        $region38: #{tpu_custom_call.1} parent=31 // pred_check_branch
          %241 = sbr.rel (%p239) target = $region40
        $region39: #{tpu_custom_call.1} parent=31 // pred_region
          %242 = dma.done %s235, 2048
        $region40: #{tpu_custom_call.1} parent=31 // pred_fallthru
          _
        %s243 = sand.u32 %s21, 1
        %s244 = scalar_lea.sflag [#allocation7], %s243
        %s245 = sand.u32 %s104, 1
        %s246 = scalar_lea.vmem [#allocation8], %s245
        // Predicated region
        $region41: #{tpu_custom_call.1} parent=31 // pred_check
          %p247 = pneg %p117
        $region42: #{tpu_custom_call.1} parent=31 // pred_check_branch
          %249 = sbr.rel (%p247) target = $region44
        $region43: #{tpu_custom_call.1} parent=31 // pred_region
          %250 = dma.done %s244, 16
        $region44: #{tpu_custom_call.1} parent=31 // pred_fallthru
          _
        %p251 = pneg %p63
        %p252 = pneg %p60
        %s253 = sand.u32 %s21, 1
        %s254 = scalar_lea.sflag [#allocation7], %s253
        %s255 = sand.u32 %s78, 1
        %s256 = smul.addr %s255, 128
        %s257 = scalar_lea.vmem [#allocation6], %s256
        %p258 = pneg %p91
        %p259 = pneg %p88
        %s260 = sand.u32 %s21, 1
        %s261 = scalar_lea.sflag [#allocation7], %s260
        %s262 = sand.u32 %s104, 1
        %s263 = scalar_lea.vmem [#allocation8], %s262
        %p264 = pneg %p117
        %p265 = pneg %p114
        %p266 = pneg %p145
        %p267 = pneg %p142
        %s268 = sand.u32 %s132, 1
        %s269 = scalar_lea.sflag [#allocation5], %s268
        %s270 = sand.u32 %s132, 1
        %s271 = smul.addr %s270, 16
        %s272 = scalar_lea.vmem [#allocation9], %s271
        %s273 = smul.u32 2, %s26
        %s274 = smul.u32 2, %s28
        %s275 = smul.u32 32, %s28
        %s276 = smul.u32 2, %s26
        %p278 = scmp.eq.s32.totalorder %s28, 0
        // Predicated region
        $region45: #{tpu_custom_call.1} parent=31 // pred_check
          %p279 = pneg %p278
        $region46: #{tpu_custom_call.1} parent=31 // pred_check_branch
          %281 = sbr.rel (%p279) target = $region48
        $region47: #{tpu_custom_call.1} parent=31 // pred_region
          %282 = vst [vmem:[#allocation2] sm:$0xff] 0.0
          %283 = vst [vmem:[#allocation2 + $0x8] sm:$0xff] 0.0
        $region48: #{tpu_custom_call.1} parent=31 // pred_fallthru
          _
        %v284 = vld [vmem:[#allocation2] sm:$0xff]
        %v285 = vld [vmem:[#allocation2 + $0x8] sm:$0xff]
        %v286 = vld [vmem:[#allocation3] sm:$0xff]
        %v287 = vld [vmem:[#allocation3 + $0x8] sm:$0xff]
        %v288 = vld [vmem:[%s238] sm:$0xf]
        %v289 = vld [vmem:[%s238 + $0x4] sm:$0xf]
        %v290 = vld [vmem:[%s238 + $0x8] sm:$0xf]
        %v291 = vld [vmem:[%s238 + $0xc] sm:$0xf]
        %v292 = vld [vmem:[%s238 + $0x10] sm:$0xf]
        %v293 = vld [vmem:[%s238 + $0x14] sm:$0xf]
        %v294 = vld [vmem:[%s238 + $0x18] sm:$0xf]
        %v295 = vld [vmem:[%s238 + $0x1c] sm:$0xf]
        %v296 = vld [vmem:[%s238 + $0x20] sm:$0xf]
        %v297 = vld [vmem:[%s238 + $0x24] sm:$0xf]
        %v298 = vld [vmem:[%s238 + $0x28] sm:$0xf]
        %v299 = vld [vmem:[%s238 + $0x2c] sm:$0xf]
        %v300 = vld [vmem:[%s238 + $0x30] sm:$0xf]
        %v301 = vld [vmem:[%s238 + $0x34] sm:$0xf]
        %v302 = vld [vmem:[%s238 + $0x38] sm:$0xf]
        %v303 = vld [vmem:[%s238 + $0x3c] sm:$0xf]
        %v304 = vld [vmem:[%s238 + $0x40] sm:$0xf]
        %v305 = vld [vmem:[%s238 + $0x44] sm:$0xf]
        %v306 = vld [vmem:[%s238 + $0x48] sm:$0xf]
        %v307 = vld [vmem:[%s238 + $0x4c] sm:$0xf]
        %v308 = vld [vmem:[%s238 + $0x50] sm:$0xf]
        %v309 = vld [vmem:[%s238 + $0x54] sm:$0xf]
        %v310 = vld [vmem:[%s238 + $0x58] sm:$0xf]
        %v311 = vld [vmem:[%s238 + $0x5c] sm:$0xf]
        %v312 = vld [vmem:[%s238 + $0x60] sm:$0xf]
        %v313 = vld [vmem:[%s238 + $0x64] sm:$0xf]
        %v314 = vld [vmem:[%s238 + $0x68] sm:$0xf]
        %v315 = vld [vmem:[%s238 + $0x6c] sm:$0xf]
        %v316 = vld [vmem:[%s238 + $0x70] sm:$0xf]
        %v317 = vld [vmem:[%s238 + $0x74] sm:$0xf]
        %v318 = vld [vmem:[%s238 + $0x78] sm:$0xf]
        %v319 = vld [vmem:[%s238 + $0x7c] sm:$0xf]
        %v322 = vunpack.c.l.b16 %v286
        %v323 = vunpack.c.h.b16 %v286
        %v324 = vunpack.c.l.b16 %v287
        %v325 = vunpack.c.h.b16 %v287
        %v326 = vpack.c.b16 %v324, %v322
        %v327 = vpack.c.b16 %v325, %v323
        %v362 = vunpack.c.l.b16 %v288
        %v363 = vunpack.c.l.b16 %v289
        %v364 = vunpack.c.l.b16 %v290
        %v365 = vunpack.c.l.b16 %v291
        %v366 = vunpack.c.l.b16 %v292
        %v367 = vunpack.c.l.b16 %v293
        %v368 = vunpack.c.l.b16 %v294
        %v369 = vunpack.c.l.b16 %v295
        %v370 = vunpack.c.l.b16 %v296
        %v371 = vunpack.c.l.b16 %v297
        %v372 = vunpack.c.l.b16 %v298
        %v373 = vunpack.c.l.b16 %v299
        %v374 = vunpack.c.l.b16 %v300
        %v375 = vunpack.c.l.b16 %v301
        %v376 = vunpack.c.l.b16 %v302
        %v377 = vunpack.c.l.b16 %v303
        %v378 = vunpack.c.l.b16 %v304
        %v379 = vunpack.c.l.b16 %v305
        %v380 = vunpack.c.l.b16 %v306
        %v381 = vunpack.c.l.b16 %v307
        %v382 = vunpack.c.l.b16 %v308
        %v383 = vunpack.c.l.b16 %v309
        %v384 = vunpack.c.l.b16 %v310
        %v385 = vunpack.c.l.b16 %v311
        %v386 = vunpack.c.l.b16 %v312
        %v387 = vunpack.c.l.b16 %v313
        %v388 = vunpack.c.l.b16 %v314
        %v389 = vunpack.c.l.b16 %v315
        %v390 = vunpack.c.l.b16 %v316
        %v391 = vunpack.c.l.b16 %v317
        %v392 = vunpack.c.l.b16 %v318
        %v393 = vunpack.c.l.b16 %v319
        %v394 = vpack.c.b16 %v363, %v362
        %v395 = vpack.c.b16 %v365, %v364
        %v396 = vpack.c.b16 %v367, %v366
        %v397 = vpack.c.b16 %v369, %v368
        %v398 = vpack.c.b16 %v371, %v370
        %v399 = vpack.c.b16 %v373, %v372
        %v400 = vpack.c.b16 %v375, %v374
        %v401 = vpack.c.b16 %v377, %v376
        %v402 = vpack.c.b16 %v379, %v378
        %v403 = vpack.c.b16 %v381, %v380
        %v404 = vpack.c.b16 %v383, %v382
        %v405 = vpack.c.b16 %v385, %v384
        %v406 = vpack.c.b16 %v387, %v386
        %v407 = vpack.c.b16 %v389, %v388
        %v408 = vpack.c.b16 %v391, %v390
        %v409 = vpack.c.b16 %v393, %v392
        %426 = vmatprep.subr.bf16.mxu0 0
        %427 = vmatpush1.bf16.msra.mxu0 %v394
        %428 = vmatprep.subr.bf16.mxu0 0
        %429 = vmatpush1.bf16.msra.mxu0 %v395
        %430 = vmatprep.subr.bf16.mxu0 0
        %431 = vmatpush1.bf16.msra.mxu0 %v396
        %432 = vmatprep.subr.bf16.mxu0 0
        %433 = vmatpush1.bf16.msra.mxu0 %v397
        %434 = vmatprep.subr.bf16.mxu0 0
        %435 = vmatpush1.bf16.msra.mxu0 %v398
        %436 = vmatprep.subr.bf16.mxu0 0
        %437 = vmatpush1.bf16.msra.mxu0 %v399
        %438 = vmatprep.subr.bf16.mxu0 0
        %439 = vmatpush1.bf16.msra.mxu0 %v400
        %440 = vmatprep.subr.bf16.mxu0 0
        %441 = vmatpush1.bf16.msra.mxu0 %v401
        %442 = vmatprep.subr.bf16.mxu0 0
        %443 = vmatpush1.bf16.msra.mxu0 %v402
        %444 = vmatprep.subr.bf16.mxu0 0
        %445 = vmatpush1.bf16.msra.mxu0 %v403
        %446 = vmatprep.subr.bf16.mxu0 0
        %447 = vmatpush1.bf16.msra.mxu0 %v404
        %448 = vmatprep.subr.bf16.mxu0 0
        %449 = vmatpush1.bf16.msra.mxu0 %v405
        %450 = vmatprep.subr.bf16.mxu0 0
        %451 = vmatpush1.bf16.msra.mxu0 %v406
        %452 = vmatprep.subr.bf16.mxu0 0
        %453 = vmatpush1.bf16.msra.mxu0 %v407
        %454 = vmatprep.subr.bf16.mxu0 0
        %455 = vmatpush1.bf16.msra.mxu0 %v408
        %456 = vmatprep.subr.bf16.mxu0 0
        %457 = vmatpush1.bf16.msra.mxu0 %v409
        %458 = vmatprep.mubr.bf16.mxu0 %v327
        %459 = vmatmul.mubr.bf16.gmra.mrb[0].mxu0 %v326
        %v460 = vpop.f32.mrb[0].mxu0
        %v461 = vadd.f32 0.0, %v460
        %v462 = vpop.f32.mrb[0].mxu0
        %v463 = vpop.f32.mrb[0].mxu0
        %v464 = vadd.f32 0.0, %v463
        %v465 = vpop.f32.mrb[0].mxu0
        %466 = vdwg.mxu0
        %v467 = vadd.f32 %v284, %v461
        %v468 = vadd.f32 %v285, %v464
        %469 = vst [vmem:[#allocation2] sm:$0xff] %v467
        %470 = vst [vmem:[#allocation2 + $0x8] sm:$0xff] %v468
        // Predicated region
        $region49: #{tpu_custom_call.1} parent=31 // pred_check
          %p471 = pneg %p278
        $region50: #{tpu_custom_call.1} parent=31 // pred_check_branch
          %473 = sbr.rel (%p471) target = $region52
        $region51: #{tpu_custom_call.1} parent=31 // pred_region
          %v474 = vld [vmem:[#allocation2] sm:$0xff]
          %v475 = vld [vmem:[#allocation2 + $0x8] sm:$0xff]
          %v476 = vld [vmem:[%s246] sm:$0x1]
          %v478 = vlaneseq
          %v479 = vshrl.u32 %v478, 7
          %v480 = vsub.s32 0, %v479
          %v481 = vrot.slane %v476, %v480
          %v483 = vadd.f32 %v474, %v481
          %v484 = vadd.f32 %v475, %v481
          %485 = vst [vmem:[%s272] sm:$0xff] %v483
          %486 = vst [vmem:[%s272 + $0x8] sm:$0xff] %v484
        $region52: #{tpu_custom_call.1} parent=31 // pred_fallthru
          _
        %s487 = sand.u32 %s132, 1
        %s488 = scalar_lea.sflag [#allocation5], %s487
        %s489 = sand.u32 %s132, 1
        %s490 = smul.addr %s489, 16
        %s491 = scalar_lea.vmem [#allocation9], %s490
        // Predicated region
        $region53: #{tpu_custom_call.1} parent=31 // pred_check
          %p492 = pneg %p142
        $region54: #{tpu_custom_call.1} parent=31 // pred_check_branch
          %494 = sbr.rel (%p492) target = $region56
        $region55: #{tpu_custom_call.1} parent=31 // pred_region
          %s495 = smul.u32 2, %s26
          %s497 = ssub.s32 256, 256
          %498 = vsyncadd %s488, %s497
          %s499 = smul.addr %s495, 2
          %s500 = sadd.s32 %s27, %s499
          %s501 = smul.addr %s500, 128
          %s502 = scalar_lea.hbm %s3, %s501
          %s503 = sshll.u32 %s491, 4
          %s504 = int_to_ptr.vmem [resolvable:$true] %s503
          %509 = dma.vmem_to_hbm [thread:$0]  %s504, 256, %s502, %s488, 128, 256, 8
        $region56: #{tpu_custom_call.1} parent=31 // pred_fallthru
          _
      $region32: #{tpu_custom_call.1} parent=5 // pred_fallthru
        _
      %p510 = scmp.le.s32.totalorder 2, %s16
      // Predicated region
      $region57: #{tpu_custom_call.1} parent=5 // pred_check
        %p511 = pneg %p510
      $region58: #{tpu_custom_call.1} parent=5 // pred_check_branch
        %513 = sbr.rel (%p511) target = $region60
      $region59: #{tpu_custom_call.1} parent=5 // pred_region
        %s514 = ssub.s32 %s16, 2
        // Predicated region
        $region61: #{tpu_custom_call.1} parent=59 // pred_check
          %p515 = pneg %p148
        $region62: #{tpu_custom_call.1} parent=59 // pred_check_branch
          %517 = sbr.rel (%p515) target = $region64
        $region63: #{tpu_custom_call.1} parent=59 // pred_region
          %s518 = sand.u32 %s133, 1
          %s519 = scalar_lea.sflag [#allocation5], %s518
          %s520 = sand.u32 %s133, 1
          %s521 = smul.addr %s520, 16
          %s522 = scalar_lea.vmem [#allocation9], %s521
          %523 = dma.done %s519, 256
        $region64: #{tpu_custom_call.1} parent=59 // pred_fallthru
          _
      $region60: #{tpu_custom_call.1} parent=5 // pred_fallthru
        _
    $region6: #{tpu_custom_call.1} parent=1 // loop_footer
      %s20 = sadd.s32 1, %s16
    $region7: #{tpu_custom_call.1} parent=1 // loop_footer_branch
      %15 = sbr.rel target = $region3
    $region8: #{tpu_custom_call.1} parent=1 // loop_exit
      _
    %524 = vsyncpa [#allocation4], 1
    %s525 = scalar_lea.sflag [#allocation4], 1
    %526 = vsyncpa %s525, 1
    %527 = vsyncpa [#allocation7], 1
    %s528 = scalar_lea.sflag [#allocation7], 1
    %529 = vsyncpa %s528, 1
    %530 = vsyncpa [#allocation5], 1
    %s531 = scalar_lea.sflag [#allocation5], 1
    %532 = vsyncpa %s531, 1

</llo_original>
